<compile_context>
chip_gen: v6e
topology: v6e:2x2x1
jax: 0.10.0
libtpu: 0.0.40
codegen_flags: <defaults>
</compile_context>

<pallas_src>
import jax
import jax.numpy as jnp
from jax.experimental import pallas as pl
from jax.experimental.pallas import tpu as pltpu


# ----------------------------------------------------------------------------- kernels

def _neck_pool_kernel(x_ref, w1_ref, b1_ref, w2_ref, b2_ref, o_ref):
    # x_ref: (TN, C, HW) in raw NCHW layout.  AdaptiveAvgPool2d((1,1)) == mean over HW; the 1/HW
    # scale is folded into w1, so a plain sum (f32 accumulation, no f32 temp copy of the whole
    # tile) is exact.  The lane-axis reduce (XLU) is trivially hidden under the x DMA.
    pooled = jnp.sum(x_ref[...], axis=-1, dtype=jnp.float32)             # (TN, C), C on lanes
    h = jnp.dot(pooled.astype(w1_ref.dtype), w1_ref[...],
                preferred_element_type=jnp.float32) + b1_ref[...]        # fc1 (f32 accum)
    h = jnp.maximum(h, 0.0)                                              # ReLU
    out = jnp.dot(h.astype(w2_ref.dtype), w2_ref[...],
                  preferred_element_type=jnp.float32) + b2_ref[...]      # fc2 (f32 accum)
    o_ref[...] = out.astype(o_ref.dtype)


def _neck_nopool_kernel(x_ref, w1_ref, b1_ref, w2_ref, b2_ref, o_ref, acc_ref):
    # Grid = (batch tiles, K tiles over F = C*H*W).  fc1 is accumulated into an f32 VMEM scratch;
    # ReLU + fc2 run once on the last K step.
    k = pl.program_id(1)

    @pl.when(k == 0)
    def _init():
        acc_ref[...] = jnp.zeros_like(acc_ref)

    acc_ref[...] += jnp.dot(x_ref[...].astype(w1_ref.dtype), w1_ref[...],
                            preferred_element_type=jnp.float32)

    @pl.when(k == pl.num_programs(1) - 1)
    def _finalize():
        h = jnp.maximum(acc_ref[...] + b1_ref[...], 0.0)
        out = jnp.dot(h.astype(w2_ref.dtype), w2_ref[...],
                      preferred_element_type=jnp.float32) + b2_ref[...]
        o_ref[...] = out.astype(o_ref.dtype)


# ----------------------------------------------------------------------------- sizing helpers

def _round_up(a, m):
    return -(-a // m) * m


def _vmem_bytes_2d(rows, cols, itemsize):
    """VMEM footprint of a (rows, cols) tile after (sublane, lane) padding."""
    sub = 8 * max(1, 4 // itemsize)           # 8 sublanes for f32, 16 for bf16, ...
    return _round_up(max(rows, 1), sub) * _round_up(max(cols, 1), 128) * itemsize


def _vmem_capacity_bytes():
    try:
        return int(pltpu.get_tpu_info().vmem_capacity_bytes)
    except Exception:
        return 64 << 20                       # conservative default (v7x per-core VMEM)


def _pick_batch_tile(N, bytes_per_row, budget_bytes):
    """Largest batch tile whose double-buffered per-row VMEM traffic fits `budget_bytes`,
    block-shape friendly, with >= 2 grid steps when N allows (so the 'parallel' batch axis
    can split across v7x's two TensorCores)."""
    tn = max(8, budget_bytes // max(1, 2 * bytes_per_row))   # 2x: double-buffered tiles
    tn = min(tn, N)
    if N >= 16:
        tn = min(tn, _round_up(-(-N // 2), 8))
    if tn < N:                                # partial-N blocks must be sublane-aligned
        tn = max(8, (tn // 128) * 128 if tn >= 128 else (tn // 8) * 8)
    return int(tn)


# ----------------------------------------------------------------------------- wrapper

def nonlinear_neck_v1(x_nchw, w1, b1, w2, b2, *, with_avg_pool=True, weights_dtype=None):
    """MoCo v2 neck forward.

    x_nchw: (N, C, H, W).  w1: (in_features, hid), b1: (hid,), w2: (hid, out), b2: (out,) --
    i.e. the transposes of the PyTorch nn.Linear weights, so y = x @ W + b == x @ weight.T + bias.
    Returns [out] with out: (N, out_channels), matching the module's list-in/list-out API.
    """
    N, C, H, W = x_nchw.shape
    hid = w1.shape[1]
    out_dim = w2.shape[1]
    assert b1.shape == (hid,) and w2.shape[0] == hid and b2.shape == (out_dim,)

    # bf16 weights halve resident weight VMEM + the one-time weight DMA (MXU runs bf16 at full
    # rate; dots still accumulate in f32).  Auto-enable only for large weights so small / f32
    # problems stay (near-)bit-exact.
    if weights_dtype is None:
        big = (w1.size + w2.size) * jnp.dtype(w1.dtype).itemsize >= (4 << 20)
        weights_dtype = jnp.bfloat16 if big else w1.dtype
    w_dt = jnp.dtype(weights_dtype)

    b1_2d = b1.reshape(1, hid).astype(jnp.float32)        # biases stay f32 (added post-dot)
    b2_2d = b2.reshape(1, out_dim).astype(jnp.float32)

    vmem_cap = _vmem_capacity_bytes()
    usable = (vmem_cap * 3) // 4                           # headroom for compiler-internal scratch
    headroom = 8 << 20
    out_itemsize = jnp.dtype(x_nchw.dtype).itemsize

    if with_avg_pool:
        # ----- pooled path: one HBM pass over raw NCHW, pooling + MLP fused in one kernel -----
        assert w1.shape[0] == C
        S = H * W
        x_in = x_nchw.reshape(N, C, S)                     # no layout flip anywhere
        # Fold the 1/S pooling scale into w1 (exact: mean(x) @ w1 == sum(x) @ (w1 / S)).
        w1_k = (w1.astype(jnp.float32) / float(S)).astype(w_dt)
        w2_k = w2.astype(w_dt)

        itemsize = jnp.dtype(x_in.dtype).itemsize
        weight_vmem = (_vmem_bytes_2d(C, hid, w_dt.itemsize)
                       + _vmem_bytes_2d(hid, out_dim, w_dt.itemsize)
                       + _vmem_bytes_2d(1, hid, 4) + _vmem_bytes_2d(1, out_dim, 4))
        x_row = _vmem_bytes_2d(C, S, itemsize)             # per batch row, lane/sublane padded
        out_row = _vmem_bytes_2d(1, out_dim, out_itemsize)
        budget = max(usable - weight_vmem - headroom, 4 << 20)
        TN = _pick_batch_tile(N, x_row + out_row, budget)
        grid = (pl.cdiv(N, TN),)

        vmem_needed = weight_vmem + 2 * TN * (x_row + out_row) + headroom
        vmem_limit = int(min(max(vmem_needed, 32 << 20), (vmem_cap * 9) // 10))

        def run(single_buffer_weights):
            # Constant index_map -> weights are VMEM-resident; single-buffering them avoids the
            # default 2x allocation (reclaims VMEM for a larger TN, biggest win on v7x).
            wkw = dict(pipeline_mode=pl.Buffered(1)) if single_buffer_weights else {}
            extra = 0 if single_buffer_weights else weight_vmem
            return pl.pallas_call(
                _neck_pool_kernel,
                out_shape=jax.ShapeDtypeStruct((N, out_dim), x_nchw.dtype),
                grid=grid,
                in_specs=[
                    pl.BlockSpec((TN, C, S), lambda i: (i, 0, 0)),            # x: batch-tiled
                    pl.BlockSpec((C, hid), lambda i: (0, 0), **wkw),          # w1 (resident)
                    pl.BlockSpec((1, hid), lambda i: (0, 0), **wkw),          # b1
                    pl.BlockSpec((hid, out_dim), lambda i: (0, 0), **wkw),    # w2
                    pl.BlockSpec((1, out_dim), lambda i: (0, 0), **wkw),      # b2
                ],
                out_specs=pl.BlockSpec((TN, out_dim), lambda i: (i, 0)),
                compiler_params=pltpu.CompilerParams(
                    dimension_semantics=("parallel",),        # megacore-shard the batch axis
                    vmem_limit_bytes=int(min(vmem_limit + extra, (vmem_cap * 9) // 10)),
                ),
            )(x_in, w1_k, b1_2d, w2_k, b2_2d)

        try:
            out = run(True)
        except Exception:
            out = run(False)          # fall back to default double-buffered weights
        return [out]

    # ----- no-pool path: forward does x.view(N, -1); fc1 is K-tiled over F = C*H*W -----------
    F = C * H * W
    assert w1.shape[0] == F
    x_flat = x_nchw.reshape(N, F)
    w1_k = w1.astype(w_dt)
    w2_k = w2.astype(w_dt)

    FK = min(_round_up(F, 128), 512)                       # lane-aligned K tile
    Fp = _round_up(F, FK)
    if Fp != F:                                            # zero-pad K so no block reads garbage
        x_flat = jnp.pad(x_flat, ((0, 0), (0, Fp - F)))
        w1_k = jnp.pad(w1_k, ((0, Fp - F), (0, 0)))

    itemsize = jnp.dtype(x_flat.dtype).itemsize
    w1_blk_vmem = 2 * _vmem_bytes_2d(FK, hid, w_dt.itemsize)       # streamed -> double-buffered
    res_vmem = (_vmem_bytes_2d(hid, out_dim, w_dt.itemsize)
                + _vmem_bytes_2d(1, hid, 4) + _vmem_bytes_2d(1, out_dim, 4))
    x_row = _vmem_bytes_2d(1, FK, itemsize)
    out_row = _vmem_bytes_2d(1, out_dim, out_itemsize)
    acc_row = _vmem_bytes_2d(1, hid, 4)
    budget = max(usable - w1_blk_vmem - res_vmem - headroom, 4 << 20)
    TN = _pick_batch_tile(N, x_row + out_row + acc_row, budget)
    grid = (pl.cdiv(N, TN), Fp // FK)

    vmem_needed = (w1_blk_vmem + res_vmem + headroom
                   + TN * (2 * x_row + 2 * out_row + acc_row))
    vmem_limit = int(min(max(vmem_needed, 32 << 20), (vmem_cap * 9) // 10))

    out = pl.pallas_call(
        _neck_nopool_kernel,
        out_shape=jax.ShapeDtypeStruct((N, out_dim), x_nchw.dtype),
        grid=grid,
        in_specs=[
            pl.BlockSpec((TN, FK), lambda i, k: (i, k)),           # x block (batch, K)
            pl.BlockSpec((FK, hid), lambda i, k: (k, 0)),          # w1 K-slice (streamed)
            pl.BlockSpec((1, hid), lambda i, k: (0, 0)),           # b1
            pl.BlockSpec((hid, out_dim), lambda i, k: (0, 0)),     # w2
            pl.BlockSpec((1, out_dim), lambda i, k: (0, 0)),       # b2
        ],
        out_specs=pl.BlockSpec((TN, out_dim), lambda i, k: (i, 0)),
        scratch_shapes=[pltpu.VMEM((TN, hid), jnp.float32)],       # fc1 accumulator
        compiler_params=pltpu.CompilerParams(
            dimension_semantics=("parallel", "arbitrary"),         # K axis is a reduction
            vmem_limit_bytes=vmem_limit,
        ),
    )(x_flat, w1_k, b1_2d, w2_k, b2_2d)
    return [out]


# ----------------------------------------------------------------------------- test harness

if __name__ == "__main__":
    # Small shapes consistent with the module: batch=2, in_channels=4, spatial=16x16,
    # hid_channels=32, out_channels=8.
    N, C, H, W = 2, 4, 16, 16
    hid, out_c = 32, 8

    key = jax.random.PRNGKey(0)
    kx, kw1, kw2, kw1f = jax.random.split(key, 4)

    x = jax.random.normal(kx, (N, C, H, W), dtype=jnp.float32)

    # normal_init(std=0.01, bias=0.0) on nn.Linear.  PyTorch Linear weight is (out, in); we store
    # the transpose (in, out) so the kernel computes y = x @ W + b.
    w1 = (0.01 * jax.random.normal(kw1, (hid, C), dtype=jnp.float32)).T       # (C, hid)
    b1 = jnp.zeros((hid,), dtype=jnp.float32)
    w2 = (0.01 * jax.random.normal(kw2, (out_c, hid), dtype=jnp.float32)).T   # (hid, out_c)
    b2 = jnp.zeros((out_c,), dtype=jnp.float32)

    hp = jax.lax.Precision.HIGHEST

    # 1) avg-pool path, f32 weights (exact).
    y = jax.block_until_ready(nonlinear_neck_v1(x, w1, b1, w2, b2, with_avg_pool=True)[0])
    pooled_ref = x.mean(axis=(2, 3))
    ref = jnp.dot(jnp.maximum(jnp.dot(pooled_ref, w1, precision=hp) + b1, 0.0), w2,
                  precision=hp) + b2
    assert y.shape == (N, out_c)
    assert jnp.allclose(y, ref, atol=1e-5, rtol=1e-5), "avg-pool path mismatch"

    # 2) avg-pool path with bf16 weights (the MoCo-scale VMEM/bandwidth configuration).
    y_bf = jax.block_until_ready(
        nonlinear_neck_v1(x, w1, b1, w2, b2, with_avg_pool=True,
                          weights_dtype=jnp.bfloat16)[0])
    assert jnp.allclose(y_bf, ref, atol=1e-3, rtol=2e-2), "bf16-weight path mismatch"

    # 3) with_avg_pool=False path (x.view(N, -1) -> K-tiled fc1; exercises K=2 accumulation).
    w1f = (0.01 * jax.random.normal(kw1f, (hid, C * H * W), dtype=jnp.float32)).T   # (C*H*W, hid)
    yf = jax.block_until_ready(
        nonlinear_neck_v1(x, w1f, b1, w2, b2, with_avg_pool=False)[0])
    reff = jnp.dot(jnp.maximum(jnp.dot(x.reshape(N, -1), w1f, precision=hp) + b1, 0.0), w2,
                   precision=hp) + b2
    assert yf.shape == (N, out_c)
    assert jnp.allclose(yf, reff, atol=5e-4, rtol=1e-3), "no-pool path mismatch"

    print("KERNEL_OK")
</pallas_src>

<mosaic_0001>
module attributes {stable_mosaic.version = 11 : i64} {
  func.func @_neck_pool_kernel(%arg0: i32, %arg1: memref<2x4x256xf32, #tpu.memory_space<vmem>>, %arg2: memref<4x32xf32, #tpu.memory_space<vmem>>, %arg3: memref<1x32xf32, #tpu.memory_space<vmem>>, %arg4: memref<32x8xf32, #tpu.memory_space<vmem>>, %arg5: memref<1x8xf32, #tpu.memory_space<vmem>>, %arg6: memref<2x8xf32, #tpu.memory_space<vmem>>) attributes {dimension_semantics = [#tpu.dimension_semantics<parallel>], iteration_bounds = array<i64: 1>, scalar_prefetch = 0 : i64, scratch_operands = 0 : i64, tpu.core_type = #tpu.core_type<tc>, window_params = [{transform_indices = @transform_0, window_bounds = array<i64: 2, 4, 256>}, {pipeline_mode = #tpu.pipeline_mode<synchronous>, transform_indices = @transform_1, window_bounds = array<i64: 4, 32>}, {pipeline_mode = #tpu.pipeline_mode<synchronous>, transform_indices = @transform_2, window_bounds = array<i64: 1, 32>}, {pipeline_mode = #tpu.pipeline_mode<synchronous>, transform_indices = @transform_3, window_bounds = array<i64: 32, 8>}, {pipeline_mode = #tpu.pipeline_mode<synchronous>, transform_indices = @transform_4, window_bounds = array<i64: 1, 8>}, {transform_indices = @transform_5, window_bounds = array<i64: 2, 8>}]} {
    %c0 = arith.constant 0 : index
    %c0_0 = arith.constant 0 : index
    %c0_1 = arith.constant 0 : index
    %0 = vector.load %arg1[%c0, %c0_0, %c0_1] : memref<2x4x256xf32, #tpu.memory_space<vmem>>, vector<2x4x256xf32>
    %cst = arith.constant dense<0.000000e+00> : vector<2x4xf32>
    %1 = vector.multi_reduction <add>, %0, %cst [2] : vector<2x4x256xf32> to vector<2x4xf32>
    %c0_2 = arith.constant 0 : index
    %c0_3 = arith.constant 0 : index
    %2 = vector.load %arg2[%c0_2, %c0_3] : memref<4x32xf32, #tpu.memory_space<vmem>>, vector<4x32xf32>
    %cst_4 = arith.constant dense<0.000000e+00> : vector<2x32xf32>
    %3 = tpu.matmul %1, %2, %cst_4 {dimension_numbers = #tpu.dot_dimension_numbers<[1], [0], [0], [1], [0, 0, 1, 1], [], []>} : vector<2x4xf32>, vector<4x32xf32>, vector<2x32xf32> -> vector<2x32xf32>
    %c0_5 = arith.constant 0 : index
    %c0_6 = arith.constant 0 : index
    %4 = vector.load %arg3[%c0_5, %c0_6] : memref<1x32xf32, #tpu.memory_space<vmem>>, vector<1x32xf32>
    %5 = vector.broadcast %4 : vector<1x32xf32> to vector<2x32xf32>
    %6 = arith.addf %3, %5 : vector<2x32xf32>
    %cst_7 = arith.constant 0.000000e+00 : f32
    %7 = vector.broadcast %cst_7 : f32 to vector<2x32xf32>
    %8 = arith.maximumf %6, %7 : vector<2x32xf32>
    %c0_8 = arith.constant 0 : index
    %c0_9 = arith.constant 0 : index
    %9 = vector.load %arg4[%c0_8, %c0_9] : memref<32x8xf32, #tpu.memory_space<vmem>>, vector<32x8xf32>
    %cst_10 = arith.constant dense<0.000000e+00> : vector<2x8xf32>
    %10 = tpu.matmul %8, %9, %cst_10 {dimension_numbers = #tpu.dot_dimension_numbers<[1], [0], [0], [1], [0, 0, 1, 1], [], []>} : vector<2x32xf32>, vector<32x8xf32>, vector<2x8xf32> -> vector<2x8xf32>
    %c0_11 = arith.constant 0 : index
    %c0_12 = arith.constant 0 : index
    %11 = vector.load %arg5[%c0_11, %c0_12] : memref<1x8xf32, #tpu.memory_space<vmem>>, vector<1x8xf32>
    %12 = vector.broadcast %11 : vector<1x8xf32> to vector<2x8xf32>
    %13 = arith.addf %10, %12 : vector<2x8xf32>
    %c0_13 = arith.constant 0 : index
    %c0_14 = arith.constant 0 : index
    %14 = vector.load %arg6[%c0_13, %c0_14] : memref<2x8xf32, #tpu.memory_space<vmem>>, vector<2x8xf32>
    tpu.vector_store %arg6[%c0_13, %c0_14], %13 {strides = array<i32>} : memref<2x8xf32, #tpu.memory_space<vmem>>, vector<2x8xf32>,
    return
  }
  func.func @transform_0(%arg0: i32) -> (i32, i32, i32) {
    %c0_i32 = arith.constant 0 : i32
    %c0_i32_0 = arith.constant 0 : i32
    %c0_i32_1 = arith.constant 0 : i32
    return %arg0, %c0_i32, %c0_i32_0 : i32, i32, i32
  }
  func.func @transform_1(%arg0: i32) -> (i32, i32) {
    %c0_i32 = arith.constant 0 : i32
    %c0_i32_0 = arith.constant 0 : i32
    %c0_i32_1 = arith.constant 0 : i32
    return %c0_i32, %c0_i32_0 : i32, i32
  }
  func.func @transform_2(%arg0: i32) -> (i32, i32) {
    %c0_i32 = arith.constant 0 : i32
    %c0_i32_0 = arith.constant 0 : i32
    %c0_i32_1 = arith.constant 0 : i32
    return %c0_i32, %c0_i32_0 : i32, i32
  }
  func.func @transform_3(%arg0: i32) -> (i32, i32) {
    %c0_i32 = arith.constant 0 : i32
    %c0_i32_0 = arith.constant 0 : i32
    %c0_i32_1 = arith.constant 0 : i32
    return %c0_i32, %c0_i32_0 : i32, i32
  }
  func.func @transform_4(%arg0: i32) -> (i32, i32) {
    %c0_i32 = arith.constant 0 : i32
    %c0_i32_0 = arith.constant 0 : i32
    %c0_i32_1 = arith.constant 0 : i32
    return %c0_i32, %c0_i32_0 : i32, i32
  }
  func.func @transform_5(%arg0: i32) -> (i32, i32) {
    %c0_i32 = arith.constant 0 : i32
    %c0_i32_0 = arith.constant 0 : i32
    return %arg0, %c0_i32 : i32, i32
  }
}

module attributes {stable_mosaic.version = 11 : i64} {
  func.func @_neck_pool_kernel(%arg0: i32, %arg1: memref<2x4x256xf32, #tpu.memory_space<vmem>>, %arg2: memref<4x32xf32, #tpu.memory_space<vmem>>, %arg3: memref<1x32xf32, #tpu.memory_space<vmem>>, %arg4: memref<32x8xf32, #tpu.memory_space<vmem>>, %arg5: memref<1x8xf32, #tpu.memory_space<vmem>>, %arg6: memref<2x8xf32, #tpu.memory_space<vmem>>) attributes {dimension_semantics = [#tpu.dimension_semantics<parallel>], iteration_bounds = array<i64: 1>, scalar_prefetch = 0 : i64, scratch_operands = 0 : i64, tpu.core_type = #tpu.core_type<tc>, window_params = [{transform_indices = @transform_0, window_bounds = array<i64: 2, 4, 256>}, {pipeline_mode = #tpu.pipeline_mode<synchronous>, transform_indices = @transform_1, window_bounds = array<i64: 4, 32>}, {pipeline_mode = #tpu.pipeline_mode<synchronous>, transform_indices = @transform_2, window_bounds = array<i64: 1, 32>}, {pipeline_mode = #tpu.pipeline_mode<synchronous>, transform_indices = @transform_3, window_bounds = array<i64: 32, 8>}, {pipeline_mode = #tpu.pipeline_mode<synchronous>, transform_indices = @transform_4, window_bounds = array<i64: 1, 8>}, {transform_indices = @transform_5, window_bounds = array<i64: 2, 8>}]} {
    %c0 = arith.constant 0 : index
    %c0_0 = arith.constant 0 : index
    %c0_1 = arith.constant 0 : index
    %0 = vector.load %arg1[%c0, %c0_0, %c0_1] : memref<2x4x256xf32, #tpu.memory_space<vmem>>, vector<2x4x256xf32>
    %cst = arith.constant dense<0.000000e+00> : vector<2x4xf32>
    %1 = vector.multi_reduction <add>, %0, %cst [2] : vector<2x4x256xf32> to vector<2x4xf32>
    %c0_2 = arith.constant 0 : index
    %c0_3 = arith.constant 0 : index
    %2 = vector.load %arg2[%c0_2, %c0_3] : memref<4x32xf32, #tpu.memory_space<vmem>>, vector<4x32xf32>
    %cst_4 = arith.constant dense<0.000000e+00> : vector<2x32xf32>
    %3 = tpu.matmul %1, %2, %cst_4 {dimension_numbers = #tpu.dot_dimension_numbers<[1], [0], [0], [1], [0, 0, 1, 1], [], []>} : vector<2x4xf32>, vector<4x32xf32>, vector<2x32xf32> -> vector<2x32xf32>
    %c0_5 = arith.constant 0 : index
    %c0_6 = arith.constant 0 : index
    %4 = vector.load %arg3[%c0_5, %c0_6] : memref<1x32xf32, #tpu.memory_space<vmem>>, vector<1x32xf32>
    %5 = vector.broadcast %4 : vector<1x32xf32> to vector<2x32xf32>
    %6 = arith.addf %3, %5 : vector<2x32xf32>
    %cst_7 = arith.constant 0.000000e+00 : f32
    %7 = vector.broadcast %cst_7 : f32 to vector<2x32xf32>
    %8 = arith.maximumf %6, %7 : vector<2x32xf32>
    %c0_8 = arith.constant 0 : index
    %c0_9 = arith.constant 0 : index
    %9 = vector.load %arg4[%c0_8, %c0_9] : memref<32x8xf32, #tpu.memory_space<vmem>>, vector<32x8xf32>
    %cst_10 = arith.constant dense<0.000000e+00> : vector<2x8xf32>
    %10 = tpu.matmul %8, %9, %cst_10 {dimension_numbers = #tpu.dot_dimension_numbers<[1], [0], [0], [1], [0, 0, 1, 1], [], []>} : vector<2x32xf32>, vector<32x8xf32>, vector<2x8xf32> -> vector<2x8xf32>
    %c0_11 = arith.constant 0 : index
    %c0_12 = arith.constant 0 : index
    %11 = vector.load %arg5[%c0_11, %c0_12] : memref<1x8xf32, #tpu.memory_space<vmem>>, vector<1x8xf32>
    %12 = vector.broadcast %11 : vector<1x8xf32> to vector<2x8xf32>
    %13 = arith.addf %10, %12 : vector<2x8xf32>
    %c0_13 = arith.constant 0 : index
    %c0_14 = arith.constant 0 : index
    %14 = vector.load %arg6[%c0_13, %c0_14] : memref<2x8xf32, #tpu.memory_space<vmem>>, vector<2x8xf32>
    tpu.vector_store %arg6[%c0_13, %c0_14], %13 {strides = array<i32>} : memref<2x8xf32, #tpu.memory_space<vmem>>, vector<2x8xf32>,
    return
  }
  func.func @transform_0(%arg0: i32) -> (i32, i32, i32) {
    %c0_i32 = arith.constant 0 : i32
    %c0_i32_0 = arith.constant 0 : i32
    %c0_i32_1 = arith.constant 0 : i32
    return %arg0, %c0_i32, %c0_i32_0 : i32, i32, i32
  }
  func.func @transform_1(%arg0: i32) -> (i32, i32) {
    %c0_i32 = arith.constant 0 : i32
    %c0_i32_0 = arith.constant 0 : i32
    %c0_i32_1 = arith.constant 0 : i32
    return %c0_i32, %c0_i32_0 : i32, i32
  }
  func.func @transform_2(%arg0: i32) -> (i32, i32) {
    %c0_i32 = arith.constant 0 : i32
    %c0_i32_0 = arith.constant 0 : i32
    %c0_i32_1 = arith.constant 0 : i32
    return %c0_i32, %c0_i32_0 : i32, i32
  }
  func.func @transform_3(%arg0: i32) -> (i32, i32) {
    %c0_i32 = arith.constant 0 : i32
    %c0_i32_0 = arith.constant 0 : i32
    %c0_i32_1 = arith.constant 0 : i32
    return %c0_i32, %c0_i32_0 : i32, i32
  }
  func.func @transform_4(%arg0: i32) -> (i32, i32) {
    %c0_i32 = arith.constant 0 : i32
    %c0_i32_0 = arith.constant 0 : i32
    %c0_i32_1 = arith.constant 0 : i32
    return %c0_i32, %c0_i32_0 : i32, i32
  }
  func.func @transform_5(%arg0: i32) -> (i32, i32) {
    %c0_i32 = arith.constant 0 : i32
    %c0_i32_0 = arith.constant 0 : i32
    return %arg0, %c0_i32 : i32, i32
  }
}

</mosaic_0001>

<llo_original>
// kernel: tpu_custom_call.1
$region0: #{tpu_custom_call.1}
  #allocation0 [shape = 'u32[]', space=smem, size = 0x4, offset = 0x4, fixed_abs, tag = 'smem constant byte address 0x4 - core index']
  #allocation1 [shape = 'u32[144,128]{1,0:T(1,128)}', space=vmem, size = 0x12000, scoped, tag = 'internal scratch']
  %s0 = inlined_call_operand.vmem [shape: f32[2,4,256], index: 0, kind: input, shape index: {}]
  %s1 = inlined_call_operand.vmem [shape: f32[4,32], index: 1, kind: input, shape index: {}]
  %s2 = inlined_call_operand.vmem [shape: f32[1,32], index: 2, kind: input, shape index: {}]
  %s3 = inlined_call_operand.vmem [shape: f32[32,8], index: 3, kind: input, shape index: {}]
  %s4 = inlined_call_operand.vmem [shape: f32[1,8], index: 4, kind: input, shape index: {}]
  %s5 = inlined_call_operand.hbm [shape: f32[2,8], index: 5, kind: output, shape index: {}]
  %s6 = sld [smem:[#allocation0]]
  $region30: #{tpu_custom_call.1} parent=0
    _
  %s8 = ssub.s32 1, %s6
  %s9 = scalar_select 0, %s8, %s6
  $region1: #{tpu_custom_call.1} parent=0
    #allocation2 [shape = 'u8[1024]{0}', space=vmem, size = 0x400, scoped, tag = 'output window, operand 0, single buffered']
    #allocation3 [shape = 's32[1]{0}', space=sflag, size = 0x4, scoped, tag = 'scoped memory for tpu_custom_call.1']
    %10 = vsyncpa [#allocation3], 0
    // Predicated region
    $region2: #{tpu_custom_call.1} parent=1 // pred_check
      _
    $region3: #{tpu_custom_call.1} parent=1 // pred_check_branch
      %12 = sbr.rel (0) target = $region5
    $region4: #{tpu_custom_call.1} parent=1 // pred_region
      _
    $region5: #{tpu_custom_call.1} parent=1 // pred_fallthru
      _
    // Predicated region
    $region6: #{tpu_custom_call.1} parent=1 // pred_check
      _
    $region7: #{tpu_custom_call.1} parent=1 // pred_check_branch
      %14 = sbr.rel (0) target = $region9
    $region8: #{tpu_custom_call.1} parent=1 // pred_region
      _
    $region9: #{tpu_custom_call.1} parent=1 // pred_fallthru
      _
    // Predicated region
    $region10: #{tpu_custom_call.1} parent=1 // pred_check
      _
    $region11: #{tpu_custom_call.1} parent=1 // pred_check_branch
      %16 = sbr.rel (0) target = $region13
    $region12: #{tpu_custom_call.1} parent=1 // pred_region
      _
    $region13: #{tpu_custom_call.1} parent=1 // pred_fallthru
      _
    // Predicated region
    $region14: #{tpu_custom_call.1} parent=1 // pred_check
      _
    $region15: #{tpu_custom_call.1} parent=1 // pred_check_branch
      %18 = sbr.rel (0) target = $region17
    $region16: #{tpu_custom_call.1} parent=1 // pred_region
      _
    $region17: #{tpu_custom_call.1} parent=1 // pred_fallthru
      _
    // Predicated region
    $region18: #{tpu_custom_call.1} parent=1 // pred_check
      _
    $region19: #{tpu_custom_call.1} parent=1 // pred_check_branch
      %20 = sbr.rel (0) target = $region21
    $region20: #{tpu_custom_call.1} parent=1 // pred_region
      _
    $region21: #{tpu_custom_call.1} parent=1 // pred_fallthru
      _
    %v21 = vld [vmem:[%s0] sm:$0xff]
    %v22 = vld [vmem:[%s0 + $0x8] sm:$0xff]
    %v25 = vcombine.high %v21, %v21
    %v26 = vcombine.high %v22, %v22
    %vm29 = vcmask 1043456
    %v30 = vsel %vm29, %v21, 0.0
    %v31 = vsel %vm29, %v25, 0.0
    %v32 = vadd.f32 %v30, %v31
    %33 = vadd.xlane.f32.xlu0 %v32
    %v34 = vpop.xlane.xlu0 %33
    %v35 = vsel %vm29, %v22, 0.0
    %v36 = vsel %vm29, %v26, 0.0
    %v37 = vadd.f32 %v35, %v36
    %38 = vadd.xlane.f32.xlu0 %v37
    %v39 = vpop.xlane.xlu0 %38
    %v40 = vld [vmem:[%s1] sm:$0xf]
    %v41 = vld [vmem:[%s2] sm:$0x1]
    %v43 = vlaneseq
    %v44 = vshrl.u32 %v43, 7
    %v45 = vsub.s32 0, %v44
    %v46 = vrot.slane %v41, %v45
    %v50 = vlaneseq
    %v51 = vand.u32 %v50, 127
    %v52 = vlaneseq
    %v53 = vshrl.u32 %v52, 7
    %v54 = vsub.s32 %v51, %v53
    %v55 = vrot.slane %v34, %v54
    %v56 = vlaneseq
    %v57 = vshrl.u32 %v56, 7
    %v58 = vsub.s32 %v51, %v57
    %v59 = vrot.slane %v39, %v58
    %vm60 = vcmask 1041409
    %v61 = vsel %vm60, %v59, %v55
    %vm62 = vcmask 31744
    %v63 = vsel %vm62, %v61, 0
    %v66 = vsel %vm29, %v40, 0
    %68 = vmatprep.subr.mxu0 0.0
    %69 = vmatpush1.msra.mxu0 0.0
    %70 = vmatprep.subr.mxu0 0.0
    %71 = vmatpush1.msra.mxu0 0.0
    %72 = vmatprep.subr.mxu0 0.0
    %73 = vmatpush1.msra.mxu0 0.0
    %74 = vmatprep.subr.mxu0 0.0
    %75 = vmatpush1.msra.mxu0 0.0
    %76 = vmatprep.subr.mxu0 0.0
    %77 = vmatpush1.msra.mxu0 0.0
    %78 = vmatprep.subr.mxu0 0.0
    %79 = vmatpush1.msra.mxu0 0.0
    %80 = vmatprep.subr.mxu0 0.0
    %81 = vmatpush1.msra.mxu0 0.0
    %82 = vmatprep.subr.mxu0 0.0
    %83 = vmatpush1.msra.mxu0 0.0
    %84 = vmatprep.subr.mxu0 0.0
    %85 = vmatpush1.msra.mxu0 0.0
    %86 = vmatprep.subr.mxu0 0.0
    %87 = vmatpush1.msra.mxu0 0.0
    %88 = vmatprep.subr.mxu0 0.0
    %89 = vmatpush1.msra.mxu0 0.0
    %90 = vmatprep.subr.mxu0 0.0
    %91 = vmatpush1.msra.mxu0 0.0
    %92 = vmatprep.subr.mxu0 0.0
    %93 = vmatpush1.msra.mxu0 0.0
    %94 = vmatprep.subr.mxu0 0.0
    %95 = vmatpush1.msra.mxu0 0.0
    %96 = vmatprep.subr.mxu0 0.0
    %97 = vmatpush1.msra.mxu0 0.0
    %98 = vmatprep.subr.mxu0 0.0
    %99 = vmatpush1.msra.mxu0 %v66
    %100 = vmatprep.subr.mxu0 0.0
    %101 = vmatpush2.msra.mxu0 0.0
    %102 = vmatprep.subr.mxu0 0.0
    %103 = vmatpush2.msra.mxu0 0.0
    %104 = vmatprep.subr.mxu0 0.0
    %105 = vmatpush2.msra.mxu0 0.0
    %106 = vmatprep.subr.mxu0 0.0
    %107 = vmatpush2.msra.mxu0 0.0
    %108 = vmatprep.subr.mxu0 0.0
    %109 = vmatpush2.msra.mxu0 0.0
    %110 = vmatprep.subr.mxu0 0.0
    %111 = vmatpush2.msra.mxu0 0.0
    %112 = vmatprep.subr.mxu0 0.0
    %113 = vmatpush2.msra.mxu0 0.0
    %114 = vmatprep.subr.mxu0 0.0
    %115 = vmatpush2.msra.mxu0 0.0
    %116 = vmatprep.subr.mxu0 0.0
    %117 = vmatpush2.msra.mxu0 0.0
    %118 = vmatprep.subr.mxu0 0.0
    %119 = vmatpush2.msra.mxu0 0.0
    %120 = vmatprep.subr.mxu0 0.0
    %121 = vmatpush2.msra.mxu0 0.0
    %122 = vmatprep.subr.mxu0 0.0
    %123 = vmatpush2.msra.mxu0 0.0
    %124 = vmatprep.subr.mxu0 0.0
    %125 = vmatpush2.msra.mxu0 0.0
    %126 = vmatprep.subr.mxu0 0.0
    %127 = vmatpush2.msra.mxu0 0.0
    %128 = vmatprep.subr.mxu0 0.0
    %129 = vmatpush2.msra.mxu0 0.0
    %130 = vmatprep.subr.mxu0 0.0
    %131 = vmatpush2.msra.mxu0 0.0
    %132 = vmatprep.mubr.f32.mxu0 0.0
    %133 = vmatmul.mubr.f32.gmra.mxu0 %v63
    %v134 = vpop.f32.mrf.mxu0
    %v135 = vadd.f32 %v46, %v134
    %v136 = vpop.f32.mrf.mxu0
    %137 = vdwg.mxu0
    %v138 = vmax.f32 %v135, 0.0
    %v139 = vld [vmem:[%s3] sm:$0xff]
    %v140 = vld [vmem:[%s3 + $0x8] sm:$0xff]
    %v141 = vld [vmem:[%s3 + $0x10] sm:$0xff]
    %v142 = vld [vmem:[%s3 + $0x18] sm:$0xff]
    %v143 = vld [vmem:[%s4] sm:$0x1]
    %v145 = vlaneseq
    %v146 = vshrl.u32 %v145, 7
    %v147 = vsub.s32 0, %v146
    %v148 = vrot.slane %v143, %v147
    %vm150 = vcmask 261120
    %v152 = vsel %vm150, %v138, 0
    %154 = vmatprep.subr.mxu0 0.0
    %155 = vmatpush1.msra.mxu0 0.0
    %156 = vmatprep.subr.mxu0 0.0
    %157 = vmatpush1.msra.mxu0 0.0
    %158 = vmatprep.subr.mxu0 0.0
    %159 = vmatpush1.msra.mxu0 0.0
    %160 = vmatprep.subr.mxu0 0.0
    %161 = vmatpush1.msra.mxu0 0.0
    %162 = vmatprep.subr.mxu0 0.0
    %163 = vmatpush1.msra.mxu0 0.0
    %164 = vmatprep.subr.mxu0 0.0
    %165 = vmatpush1.msra.mxu0 0.0
    %166 = vmatprep.subr.mxu0 0.0
    %167 = vmatpush1.msra.mxu0 0.0
    %168 = vmatprep.subr.mxu0 0.0
    %169 = vmatpush1.msra.mxu0 0.0
    %170 = vmatprep.subr.mxu0 0.0
    %171 = vmatpush1.msra.mxu0 0.0
    %172 = vmatprep.subr.mxu0 0.0
    %173 = vmatpush1.msra.mxu0 0.0
    %174 = vmatprep.subr.mxu0 0.0
    %175 = vmatpush1.msra.mxu0 0.0
    %176 = vmatprep.subr.mxu0 0.0
    %177 = vmatpush1.msra.mxu0 0.0
    %178 = vmatprep.subr.mxu0 0.0
    %179 = vmatpush1.msra.mxu0 %v142
    %180 = vmatprep.subr.mxu0 0.0
    %181 = vmatpush1.msra.mxu0 %v141
    %182 = vmatprep.subr.mxu0 0.0
    %183 = vmatpush1.msra.mxu0 %v140
    %184 = vmatprep.subr.mxu0 0.0
    %185 = vmatpush1.msra.mxu0 %v139
    %186 = vmatprep.subr.mxu0 0.0
    %187 = vmatpush2.msra.mxu0 0.0
    %188 = vmatprep.subr.mxu0 0.0
    %189 = vmatpush2.msra.mxu0 0.0
    %190 = vmatprep.subr.mxu0 0.0
    %191 = vmatpush2.msra.mxu0 0.0
    %192 = vmatprep.subr.mxu0 0.0
    %193 = vmatpush2.msra.mxu0 0.0
    %194 = vmatprep.subr.mxu0 0.0
    %195 = vmatpush2.msra.mxu0 0.0
    %196 = vmatprep.subr.mxu0 0.0
    %197 = vmatpush2.msra.mxu0 0.0
    %198 = vmatprep.subr.mxu0 0.0
    %199 = vmatpush2.msra.mxu0 0.0
    %200 = vmatprep.subr.mxu0 0.0
    %201 = vmatpush2.msra.mxu0 0.0
    %202 = vmatprep.subr.mxu0 0.0
    %203 = vmatpush2.msra.mxu0 0.0
    %204 = vmatprep.subr.mxu0 0.0
    %205 = vmatpush2.msra.mxu0 0.0
    %206 = vmatprep.subr.mxu0 0.0
    %207 = vmatpush2.msra.mxu0 0.0
    %208 = vmatprep.subr.mxu0 0.0
    %209 = vmatpush2.msra.mxu0 0.0
    %210 = vmatprep.subr.mxu0 0.0
    %211 = vmatpush2.msra.mxu0 0.0
    %212 = vmatprep.subr.mxu0 0.0
    %213 = vmatpush2.msra.mxu0 0.0
    %214 = vmatprep.subr.mxu0 0.0
    %215 = vmatpush2.msra.mxu0 0.0
    %216 = vmatprep.subr.mxu0 0.0
    %217 = vmatpush2.msra.mxu0 0.0
    %218 = vmatprep.mubr.f32.mxu0 0.0
    %219 = vmatmul.mubr.f32.gmra.mxu0 %v152
    %v220 = vpop.f32.mrf.mxu0
    %v221 = vadd.f32 %v148, %v220
    %v222 = vpop.f32.mrf.mxu0
    %223 = vdwg.mxu0
    %vm224 = vcmask 58368
    %225 = vst.msk [vmem:[#allocation2] sm:$0x3] %vm224, %v221
    // Predicated region
    $region22: #{tpu_custom_call.1} parent=1 // pred_check
      _
    $region23: #{tpu_custom_call.1} parent=1 // pred_check_branch
      %227 = sbr.rel (0) target = $region25
    $region24: #{tpu_custom_call.1} parent=1 // pred_region
      %s229 = ssub.s32 32, 32
      %230 = vsyncadd [#allocation3], %s229
      %s232 = sshll.u32 [#allocation2], 4
      %s233 = int_to_ptr.vmem [resolvable:$true] %s232
      %235 = dma.vmem_to_hbm [thread:$0]  %s233, 32, %s5, [#allocation3]
    $region25: #{tpu_custom_call.1} parent=1 // pred_fallthru
      _
    // Predicated region
    $region26: #{tpu_custom_call.1} parent=1 // pred_check
      _
    $region27: #{tpu_custom_call.1} parent=1 // pred_check_branch
      %237 = sbr.rel (0) target = $region29
    $region28: #{tpu_custom_call.1} parent=1 // pred_region
      %238 = dma.done [#allocation3], 32
    $region29: #{tpu_custom_call.1} parent=1 // pred_fallthru
      _
    %239 = vsyncpa [#allocation3], 1

// kernel: tpu_custom_call.1
$region0: #{tpu_custom_call.1}
  #allocation0 [shape = 'u32[]', space=smem, size = 0x4, offset = 0x4, fixed_abs, tag = 'smem constant byte address 0x4 - core index']
  #allocation1 [shape = 'u32[144,128]{1,0:T(1,128)}', space=vmem, size = 0x12000, scoped, tag = 'internal scratch']
  %s0 = inlined_call_operand.vmem [shape: f32[2,4,256], index: 0, kind: input, shape index: {}]
  %s1 = inlined_call_operand.vmem [shape: f32[4,32], index: 1, kind: input, shape index: {}]
  %s2 = inlined_call_operand.vmem [shape: f32[1,32], index: 2, kind: input, shape index: {}]
  %s3 = inlined_call_operand.vmem [shape: f32[32,8], index: 3, kind: input, shape index: {}]
  %s4 = inlined_call_operand.vmem [shape: f32[1,8], index: 4, kind: input, shape index: {}]
  %s5 = inlined_call_operand.hbm [shape: f32[2,8], index: 5, kind: output, shape index: {}]
  %s6 = sld [smem:[#allocation0]]
  $region30: #{tpu_custom_call.1} parent=0
    _
  %s8 = ssub.s32 1, %s6
  %s9 = scalar_select 0, %s8, %s6
  $region1: #{tpu_custom_call.1} parent=0
    #allocation2 [shape = 'u8[1024]{0}', space=vmem, size = 0x400, scoped, tag = 'output window, operand 0, single buffered']
    #allocation3 [shape = 's32[1]{0}', space=sflag, size = 0x4, scoped, tag = 'scoped memory for tpu_custom_call.1']
    %10 = vsyncpa [#allocation3], 0
    // Predicated region
    $region2: #{tpu_custom_call.1} parent=1 // pred_check
      _
    $region3: #{tpu_custom_call.1} parent=1 // pred_check_branch
      %12 = sbr.rel (0) target = $region5
    $region4: #{tpu_custom_call.1} parent=1 // pred_region
      _
    $region5: #{tpu_custom_call.1} parent=1 // pred_fallthru
      _
    // Predicated region
    $region6: #{tpu_custom_call.1} parent=1 // pred_check
      _
    $region7: #{tpu_custom_call.1} parent=1 // pred_check_branch
      %14 = sbr.rel (0) target = $region9
    $region8: #{tpu_custom_call.1} parent=1 // pred_region
      _
    $region9: #{tpu_custom_call.1} parent=1 // pred_fallthru
      _
    // Predicated region
    $region10: #{tpu_custom_call.1} parent=1 // pred_check
      _
    $region11: #{tpu_custom_call.1} parent=1 // pred_check_branch
      %16 = sbr.rel (0) target = $region13
    $region12: #{tpu_custom_call.1} parent=1 // pred_region
      _
    $region13: #{tpu_custom_call.1} parent=1 // pred_fallthru
      _
    // Predicated region
    $region14: #{tpu_custom_call.1} parent=1 // pred_check
      _
    $region15: #{tpu_custom_call.1} parent=1 // pred_check_branch
      %18 = sbr.rel (0) target = $region17
    $region16: #{tpu_custom_call.1} parent=1 // pred_region
      _
    $region17: #{tpu_custom_call.1} parent=1 // pred_fallthru
      _
    // Predicated region
    $region18: #{tpu_custom_call.1} parent=1 // pred_check
      _
    $region19: #{tpu_custom_call.1} parent=1 // pred_check_branch
      %20 = sbr.rel (0) target = $region21
    $region20: #{tpu_custom_call.1} parent=1 // pred_region
      _
    $region21: #{tpu_custom_call.1} parent=1 // pred_fallthru
      _
    %v21 = vld [vmem:[%s0] sm:$0xff]
    %v22 = vld [vmem:[%s0 + $0x8] sm:$0xff]
    %v25 = vcombine.high %v21, %v21
    %v26 = vcombine.high %v22, %v22
    %vm29 = vcmask 1043456
    %v30 = vsel %vm29, %v21, 0.0
    %v31 = vsel %vm29, %v25, 0.0
    %v32 = vadd.f32 %v30, %v31
    %33 = vadd.xlane.f32.xlu0 %v32
    %v34 = vpop.xlane.xlu0 %33
    %v35 = vsel %vm29, %v22, 0.0
    %v36 = vsel %vm29, %v26, 0.0
    %v37 = vadd.f32 %v35, %v36
    %38 = vadd.xlane.f32.xlu0 %v37
    %v39 = vpop.xlane.xlu0 %38
    %v40 = vld [vmem:[%s1] sm:$0xf]
    %v41 = vld [vmem:[%s2] sm:$0x1]
    %v43 = vlaneseq
    %v44 = vshrl.u32 %v43, 7
    %v45 = vsub.s32 0, %v44
    %v46 = vrot.slane %v41, %v45
    %v50 = vlaneseq
    %v51 = vand.u32 %v50, 127
    %v52 = vlaneseq
    %v53 = vshrl.u32 %v52, 7
    %v54 = vsub.s32 %v51, %v53
    %v55 = vrot.slane %v34, %v54
    %v56 = vlaneseq
    %v57 = vshrl.u32 %v56, 7
    %v58 = vsub.s32 %v51, %v57
    %v59 = vrot.slane %v39, %v58
    %vm60 = vcmask 1041409
    %v61 = vsel %vm60, %v59, %v55
    %vm62 = vcmask 31744
    %v63 = vsel %vm62, %v61, 0
    %v66 = vsel %vm29, %v40, 0
    %68 = vmatprep.subr.mxu0 0.0
    %69 = vmatpush1.msra.mxu0 0.0
    %70 = vmatprep.subr.mxu0 0.0
    %71 = vmatpush1.msra.mxu0 0.0
    %72 = vmatprep.subr.mxu0 0.0
    %73 = vmatpush1.msra.mxu0 0.0
    %74 = vmatprep.subr.mxu0 0.0
    %75 = vmatpush1.msra.mxu0 0.0
    %76 = vmatprep.subr.mxu0 0.0
    %77 = vmatpush1.msra.mxu0 0.0
    %78 = vmatprep.subr.mxu0 0.0
    %79 = vmatpush1.msra.mxu0 0.0
    %80 = vmatprep.subr.mxu0 0.0
    %81 = vmatpush1.msra.mxu0 0.0
    %82 = vmatprep.subr.mxu0 0.0
    %83 = vmatpush1.msra.mxu0 0.0
    %84 = vmatprep.subr.mxu0 0.0
    %85 = vmatpush1.msra.mxu0 0.0
    %86 = vmatprep.subr.mxu0 0.0
    %87 = vmatpush1.msra.mxu0 0.0
    %88 = vmatprep.subr.mxu0 0.0
    %89 = vmatpush1.msra.mxu0 0.0
    %90 = vmatprep.subr.mxu0 0.0
    %91 = vmatpush1.msra.mxu0 0.0
    %92 = vmatprep.subr.mxu0 0.0
    %93 = vmatpush1.msra.mxu0 0.0
    %94 = vmatprep.subr.mxu0 0.0
    %95 = vmatpush1.msra.mxu0 0.0
    %96 = vmatprep.subr.mxu0 0.0
    %97 = vmatpush1.msra.mxu0 0.0
    %98 = vmatprep.subr.mxu0 0.0
    %99 = vmatpush1.msra.mxu0 %v66
    %100 = vmatprep.subr.mxu0 0.0
    %101 = vmatpush2.msra.mxu0 0.0
    %102 = vmatprep.subr.mxu0 0.0
    %103 = vmatpush2.msra.mxu0 0.0
    %104 = vmatprep.subr.mxu0 0.0
    %105 = vmatpush2.msra.mxu0 0.0
    %106 = vmatprep.subr.mxu0 0.0
    %107 = vmatpush2.msra.mxu0 0.0
    %108 = vmatprep.subr.mxu0 0.0
    %109 = vmatpush2.msra.mxu0 0.0
    %110 = vmatprep.subr.mxu0 0.0
    %111 = vmatpush2.msra.mxu0 0.0
    %112 = vmatprep.subr.mxu0 0.0
    %113 = vmatpush2.msra.mxu0 0.0
    %114 = vmatprep.subr.mxu0 0.0
    %115 = vmatpush2.msra.mxu0 0.0
    %116 = vmatprep.subr.mxu0 0.0
    %117 = vmatpush2.msra.mxu0 0.0
    %118 = vmatprep.subr.mxu0 0.0
    %119 = vmatpush2.msra.mxu0 0.0
    %120 = vmatprep.subr.mxu0 0.0
    %121 = vmatpush2.msra.mxu0 0.0
    %122 = vmatprep.subr.mxu0 0.0
    %123 = vmatpush2.msra.mxu0 0.0
    %124 = vmatprep.subr.mxu0 0.0
    %125 = vmatpush2.msra.mxu0 0.0
    %126 = vmatprep.subr.mxu0 0.0
    %127 = vmatpush2.msra.mxu0 0.0
    %128 = vmatprep.subr.mxu0 0.0
    %129 = vmatpush2.msra.mxu0 0.0
    %130 = vmatprep.subr.mxu0 0.0
    %131 = vmatpush2.msra.mxu0 0.0
    %132 = vmatprep.mubr.f32.mxu0 0.0
    %133 = vmatmul.mubr.f32.gmra.mxu0 %v63
    %v134 = vpop.f32.mrf.mxu0
    %v135 = vadd.f32 %v46, %v134
    %v136 = vpop.f32.mrf.mxu0
    %137 = vdwg.mxu0
    %v138 = vmax.f32 %v135, 0.0
    %v139 = vld [vmem:[%s3] sm:$0xff]
    %v140 = vld [vmem:[%s3 + $0x8] sm:$0xff]
    %v141 = vld [vmem:[%s3 + $0x10] sm:$0xff]
    %v142 = vld [vmem:[%s3 + $0x18] sm:$0xff]
    %v143 = vld [vmem:[%s4] sm:$0x1]
    %v145 = vlaneseq
    %v146 = vshrl.u32 %v145, 7
    %v147 = vsub.s32 0, %v146
    %v148 = vrot.slane %v143, %v147
    %vm150 = vcmask 261120
    %v152 = vsel %vm150, %v138, 0
    %154 = vmatprep.subr.mxu0 0.0
    %155 = vmatpush1.msra.mxu0 0.0
    %156 = vmatprep.subr.mxu0 0.0
    %157 = vmatpush1.msra.mxu0 0.0
    %158 = vmatprep.subr.mxu0 0.0
    %159 = vmatpush1.msra.mxu0 0.0
    %160 = vmatprep.subr.mxu0 0.0
    %161 = vmatpush1.msra.mxu0 0.0
    %162 = vmatprep.subr.mxu0 0.0
    %163 = vmatpush1.msra.mxu0 0.0
    %164 = vmatprep.subr.mxu0 0.0
    %165 = vmatpush1.msra.mxu0 0.0
    %166 = vmatprep.subr.mxu0 0.0
    %167 = vmatpush1.msra.mxu0 0.0
    %168 = vmatprep.subr.mxu0 0.0
    %169 = vmatpush1.msra.mxu0 0.0
    %170 = vmatprep.subr.mxu0 0.0
    %171 = vmatpush1.msra.mxu0 0.0
    %172 = vmatprep.subr.mxu0 0.0
    %173 = vmatpush1.msra.mxu0 0.0
    %174 = vmatprep.subr.mxu0 0.0
    %175 = vmatpush1.msra.mxu0 0.0
    %176 = vmatprep.subr.mxu0 0.0
    %177 = vmatpush1.msra.mxu0 0.0
    %178 = vmatprep.subr.mxu0 0.0
    %179 = vmatpush1.msra.mxu0 %v142
    %180 = vmatprep.subr.mxu0 0.0
    %181 = vmatpush1.msra.mxu0 %v141
    %182 = vmatprep.subr.mxu0 0.0
    %183 = vmatpush1.msra.mxu0 %v140
    %184 = vmatprep.subr.mxu0 0.0
    %185 = vmatpush1.msra.mxu0 %v139
    %186 = vmatprep.subr.mxu0 0.0
    %187 = vmatpush2.msra.mxu0 0.0
    %188 = vmatprep.subr.mxu0 0.0
    %189 = vmatpush2.msra.mxu0 0.0
    %190 = vmatprep.subr.mxu0 0.0
    %191 = vmatpush2.msra.mxu0 0.0
    %192 = vmatprep.subr.mxu0 0.0
    %193 = vmatpush2.msra.mxu0 0.0
    %194 = vmatprep.subr.mxu0 0.0
    %195 = vmatpush2.msra.mxu0 0.0
    %196 = vmatprep.subr.mxu0 0.0
    %197 = vmatpush2.msra.mxu0 0.0
    %198 = vmatprep.subr.mxu0 0.0
    %199 = vmatpush2.msra.mxu0 0.0
    %200 = vmatprep.subr.mxu0 0.0
    %201 = vmatpush2.msra.mxu0 0.0
    %202 = vmatprep.subr.mxu0 0.0
    %203 = vmatpush2.msra.mxu0 0.0
    %204 = vmatprep.subr.mxu0 0.0
    %205 = vmatpush2.msra.mxu0 0.0
    %206 = vmatprep.subr.mxu0 0.0
    %207 = vmatpush2.msra.mxu0 0.0
    %208 = vmatprep.subr.mxu0 0.0
    %209 = vmatpush2.msra.mxu0 0.0
    %210 = vmatprep.subr.mxu0 0.0
    %211 = vmatpush2.msra.mxu0 0.0
    %212 = vmatprep.subr.mxu0 0.0
    %213 = vmatpush2.msra.mxu0 0.0
    %214 = vmatprep.subr.mxu0 0.0
    %215 = vmatpush2.msra.mxu0 0.0
    %216 = vmatprep.subr.mxu0 0.0
    %217 = vmatpush2.msra.mxu0 0.0
    %218 = vmatprep.mubr.f32.mxu0 0.0
    %219 = vmatmul.mubr.f32.gmra.mxu0 %v152
    %v220 = vpop.f32.mrf.mxu0
    %v221 = vadd.f32 %v148, %v220
    %v222 = vpop.f32.mrf.mxu0
    %223 = vdwg.mxu0
    %vm224 = vcmask 58368
    %225 = vst.msk [vmem:[#allocation2] sm:$0x3] %vm224, %v221
    // Predicated region
    $region22: #{tpu_custom_call.1} parent=1 // pred_check
      _
    $region23: #{tpu_custom_call.1} parent=1 // pred_check_branch
      %227 = sbr.rel (0) target = $region25
    $region24: #{tpu_custom_call.1} parent=1 // pred_region
      %s229 = ssub.s32 32, 32
      %230 = vsyncadd [#allocation3], %s229
      %s232 = sshll.u32 [#allocation2], 4
      %s233 = int_to_ptr.vmem [resolvable:$true] %s232
      %235 = dma.vmem_to_hbm [thread:$0]  %s233, 32, %s5, [#allocation3]
    $region25: #{tpu_custom_call.1} parent=1 // pred_fallthru
      _
    // Predicated region
    $region26: #{tpu_custom_call.1} parent=1 // pred_check
      _
    $region27: #{tpu_custom_call.1} parent=1 // pred_check_branch
      %237 = sbr.rel (0) target = $region29
    $region28: #{tpu_custom_call.1} parent=1 // pred_region
      %238 = dma.done [#allocation3], 32
    $region29: #{tpu_custom_call.1} parent=1 // pred_fallthru
      _
    %239 = vsyncpa [#allocation3], 1

</llo_original>
